<compile_context>
chip_gen: v6e
topology: v6e:2x2x1
jax: 0.10.0
libtpu: 0.0.40
codegen_flags: <defaults>
</compile_context>

<pallas_src>
import functools

import jax
import jax.numpy as jnp
from jax.experimental import pallas as pl
from jax.experimental.pallas import tpu as pltpu

_LANES = 128
_DEFAULT_BLOCK_ELEMS = 512 * 1024   # ~2 MiB f32 per input block


def _kl_kernel(mu_ref, ls_ref, o_ref, acc_ref, *,
               tile_rows, total_rows, needs_mask):
    i = pl.program_id(0)

    @pl.when(i == 0)
    def _():
        acc_ref[...] = jnp.zeros_like(acc_ref)

    # Cast (if needed) after the DMA; free on the VPU.
    mu = mu_ref[...].astype(jnp.float32)
    ls = ls_ref[...].astype(jnp.float32)

    # Elementwise KL term: 1 + log_sigma - mu^2 - exp(log_sigma)
    term = 1.0 + ls - mu * mu - jnp.exp(ls)

    if needs_mask:
        # Tail tile: zero out rows beyond the logical extent.  A select is
        # safe even if the out-of-bounds garbage produced inf/nan.
        row_idx = jax.lax.broadcasted_iota(jnp.int32, term.shape, 0)
        valid = (i * tile_rows + row_idx) < total_rows
        term = jnp.where(valid, term, 0.0)

    # Keep the reduction lane-parallel: one sublane reduce per step into a
    # per-lane VMEM accumulator; no per-step scalar / SMEM round trip.
    acc_ref[...] += jnp.sum(term, axis=0, keepdims=True)

    @pl.when(i == pl.num_programs(0) - 1)
    def _():
        o_ref[0] = -0.5 * jnp.sum(acc_ref[...])


def kl_divergence(mu, log_sigma, *, block_elems=_DEFAULT_BLOCK_ELEMS):
    """Pallas implementation of KLDivergence.forward(mu, log_sigma)."""
    assert mu.shape == log_sigma.shape
    assert mu.ndim >= 1
    n = mu.size

    # Free reshape only: lane-dense 128-wide slab when possible, otherwise the
    # native last dim as a full-extent lane block (still no data movement).
    if n % _LANES == 0:
        cols = _LANES
    else:
        cols = mu.shape[-1]
    rows = n // cols
    mu2 = mu.reshape(rows, cols)
    ls2 = log_sigma.reshape(rows, cols)

    # Pick a large, sublane-aligned row tile that fits comfortably in VMEM.
    tr = max(1, block_elems // cols)
    if tr >= rows:
        tile_rows = rows                       # single full-extent block
    else:
        tile_rows = max(8, (tr // 8) * 8)      # multiple of 8 sublanes
    num_tiles = pl.cdiv(rows, tile_rows)
    needs_mask = (rows % tile_rows) != 0

    kernel = functools.partial(
        _kl_kernel,
        tile_rows=tile_rows,
        total_rows=rows,
        needs_mask=needs_mask,
    )

    out = pl.pallas_call(
        kernel,
        out_shape=jax.ShapeDtypeStruct((1,), jnp.float32),
        grid_spec=pltpu.PrefetchScalarGridSpec(
            num_scalar_prefetch=0,
            grid=(num_tiles,),
            in_specs=[
                pl.BlockSpec((tile_rows, cols), lambda i: (i, 0)),
                pl.BlockSpec((tile_rows, cols), lambda i: (i, 0)),
            ],
            out_specs=pl.BlockSpec(memory_space=pltpu.MemorySpace.SMEM),
            scratch_shapes=[pltpu.VMEM((1, cols), jnp.float32)],
        ),
        compiler_params=pltpu.CompilerParams(
            # Shared accumulator across the reduction axis => serial.
            dimension_semantics=("arbitrary",)),
    )(mu2, ls2)
    return out[0]


def _reference(mu, log_sigma):
    return -0.5 * jnp.sum(1.0 + log_sigma - mu * mu - jnp.exp(log_sigma))


if __name__ == "__main__":
    key = jax.random.PRNGKey(0)
    k1, k2, k3, k4, k5, k6 = jax.random.split(key, 6)

    # Primary case: (batch=2, hidden=128) latent mean / log-std vectors.
    mu = jax.random.normal(k1, (2, 128), jnp.float32)
    log_sigma = 0.5 * jax.random.normal(k2, (2, 128), jnp.float32)

    loss = kl_divergence(mu, log_sigma)
    jax.block_until_ready(loss)
    ref = _reference(mu, log_sigma)
    assert jnp.allclose(loss, ref, rtol=1e-4, atol=1e-4), (loss, ref)

    # Secondary case: exercises the multi-tile + masked-tail path by forcing a
    # small block size (rows = 17 not divisible by the 8-row tile).
    mu_b = jax.random.normal(k3, (2, 4, 17, 16), jnp.float32)
    ls_b = 0.5 * jax.random.normal(k4, (2, 4, 17, 16), jnp.float32)

    loss_b = kl_divergence(mu_b, ls_b, block_elems=256)
    jax.block_until_ready(loss_b)
    ref_b = _reference(mu_b, ls_b)
    assert jnp.allclose(loss_b, ref_b, rtol=1e-4, atol=1e-4), (loss_b, ref_b)

    # Tertiary case: element count not divisible by 128 (native last dim used
    # as the lane block, single full-extent tile).
    mu_c = jax.random.normal(k5, (3, 5, 7), jnp.float32)
    ls_c = 0.5 * jax.random.normal(k6, (3, 5, 7), jnp.float32)

    loss_c = kl_divergence(mu_c, ls_c)
    jax.block_until_ready(loss_c)
    ref_c = _reference(mu_c, ls_c)
    assert jnp.allclose(loss_c, ref_c, rtol=1e-4, atol=1e-4), (loss_c, ref_c)

    print("KERNEL_OK")
</pallas_src>

<mosaic_0001>
module attributes {stable_mosaic.version = 11 : i64} {
  func.func @_kl_kernel(%arg0: i32, %arg1: memref<2x128xf32, #tpu.memory_space<vmem>>, %arg2: memref<2x128xf32, #tpu.memory_space<vmem>>, %arg3: memref<1xf32, #tpu.memory_space<smem>>, %arg4: memref<1x128xf32, #tpu.memory_space<vmem>>) attributes {dimension_semantics = [#tpu.dimension_semantics<arbitrary>], iteration_bounds = array<i64: 1>, scalar_prefetch = 0 : i64, scratch_operands = 1 : i64, tpu.core_type = #tpu.core_type<tc>, window_params = [{transform_indices = @transform_0, window_bounds = array<i64: 2, 128>}, {transform_indices = @transform_1, window_bounds = array<i64: 2, 128>}, {transform_indices = @transform_2, window_bounds = array<i64: 1>}]} {
    %c0_i32 = arith.constant 0 : i32
    %0 = arith.cmpi eq, %arg0, %c0_i32 : i32
    %1 = arith.extui %0 : i1 to i32
    %c0_i32_0 = arith.constant 0 : i32
    %2 = arith.cmpi ne, %1, %c0_i32_0 : i32
    scf.if %2 {
      %cst_11 = arith.constant 0.000000e+00 : f32
      %19 = vector.broadcast %cst_11 : f32 to vector<1x128xf32>
      %c0_12 = arith.constant 0 : index
      %c0_13 = arith.constant 0 : index
      %20 = vector.load %arg4[%c0_12, %c0_13] : memref<1x128xf32, #tpu.memory_space<vmem>>, vector<1x128xf32>
      tpu.vector_store %arg4[%c0_12, %c0_13], %19 {strides = array<i32>} : memref<1x128xf32, #tpu.memory_space<vmem>>, vector<1x128xf32>,
    } else {
    }
    %c0 = arith.constant 0 : index
    %c0_1 = arith.constant 0 : index
    %3 = vector.load %arg1[%c0, %c0_1] : memref<2x128xf32, #tpu.memory_space<vmem>>, vector<2x128xf32>
    %c0_2 = arith.constant 0 : index
    %c0_3 = arith.constant 0 : index
    %4 = vector.load %arg2[%c0_2, %c0_3] : memref<2x128xf32, #tpu.memory_space<vmem>>, vector<2x128xf32>
    %cst = arith.constant 1.000000e+00 : f32
    %5 = vector.broadcast %cst : f32 to vector<2x128xf32>
    %6 = arith.addf %5, %4 : vector<2x128xf32>
    %7 = arith.mulf %3, %3 : vector<2x128xf32>
    %8 = arith.subf %6, %7 : vector<2x128xf32>
    %9 = math.exp %4 : vector<2x128xf32>
    %10 = arith.subf %8, %9 : vector<2x128xf32>
    %c0_4 = arith.constant 0 : index
    %c0_5 = arith.constant 0 : index
    %11 = vector.load %arg4[%c0_4, %c0_5] : memref<1x128xf32, #tpu.memory_space<vmem>>, vector<1x128xf32>
    %cst_6 = arith.constant dense<0.000000e+00> : vector<128xf32>
    %12 = vector.multi_reduction <add>, %10, %cst_6 [0] : vector<2x128xf32> to vector<128xf32>
    %13 = vector.shape_cast %12 : vector<128xf32> to vector<1x128xf32>
    %14 = arith.addf %11, %13 : vector<1x128xf32>
    %c0_7 = arith.constant 0 : index
    %c0_8 = arith.constant 0 : index
    %15 = vector.load %arg4[%c0_7, %c0_8] : memref<1x128xf32, #tpu.memory_space<vmem>>, vector<1x128xf32>
    tpu.vector_store %arg4[%c0_7, %c0_8], %14 {strides = array<i32>} : memref<1x128xf32, #tpu.memory_space<vmem>>, vector<1x128xf32>,
    %c0_i32_9 = arith.constant 0 : i32
    %16 = arith.cmpi eq, %arg0, %c0_i32_9 : i32
    %17 = arith.extui %16 : i1 to i32
    %c0_i32_10 = arith.constant 0 : i32
    %18 = arith.cmpi ne, %17, %c0_i32_10 : i32
    scf.if %18 {
      %c0_11 = arith.constant 0 : index
      %c0_12 = arith.constant 0 : index
      %19 = vector.load %arg4[%c0_11, %c0_12] : memref<1x128xf32, #tpu.memory_space<vmem>>, vector<1x128xf32>
      %20 = vector.shape_cast %19 : vector<1x128xf32> to vector<1x1x128xf32>
      %cst_13 = arith.constant dense<0.000000e+00> : vector<1xf32>
      %21 = vector.multi_reduction <add>, %20, %cst_13 [1, 2] : vector<1x1x128xf32> to vector<1xf32>
      %22 = vector.shape_cast %21 : vector<1xf32> to vector<1x1x1xf32>
      %23 = vector.extract %22[0, 0, 0] : f32 from vector<1x1x1xf32>
      %cst_14 = arith.constant -5.000000e-01 : f32
      %24 = arith.mulf %cst_14, %23 : f32
      %c0_15 = arith.constant 0 : index
      %25 = memref.load %arg3[%c0_15] : memref<1xf32, #tpu.memory_space<smem>>
      memref.store %24, %arg3[%c0_15] : memref<1xf32, #tpu.memory_space<smem>>
    } else {
    }
    return
  }
  func.func @transform_0(%arg0: i32) -> (i32, i32) {
    %c0_i32 = arith.constant 0 : i32
    %c0_i32_0 = arith.constant 0 : i32
    return %arg0, %c0_i32 : i32, i32
  }
  func.func @transform_1(%arg0: i32) -> (i32, i32) {
    %c0_i32 = arith.constant 0 : i32
    %c0_i32_0 = arith.constant 0 : i32
    return %arg0, %c0_i32 : i32, i32
  }
  func.func @transform_2(%arg0: i32) -> i32 {
    %c0_i32 = arith.constant 0 : i32
    %c0_i32_0 = arith.constant 0 : i32
    return %c0_i32 : i32
  }
}

</mosaic_0001>

<llo_original>
// kernel: tpu_custom_call.1
$region0: #{tpu_custom_call.1}
  #allocation0 [shape = 'u32[]', space=smem, size = 0x4, offset = 0x4, fixed_abs, tag = 'smem constant byte address 0x4 - core index']
  #allocation1 [shape = 'u32[144,128]{1,0:T(1,128)}', space=vmem, size = 0x12000, scoped, tag = 'internal scratch']
  #allocation2 [shape = 'f32[1,128]{1,0:T(1,128)}', space=vmem, size = 0x200, scoped, tag = 'scratch operand']
  %s0 = inlined_call_operand.hbm [shape: f32[2,128], index: 0, kind: input, shape index: {}]
  %s1 = inlined_call_operand.hbm [shape: f32[2,128], index: 1, kind: input, shape index: {}]
  %s2 = inlined_call_operand.hbm [shape: f32[1], index: 2, kind: output, shape index: {}]
  %s3 = sld [smem:[#allocation0]]
  $region34: #{tpu_custom_call.1} parent=0
    _
  %s5 = ssub.s32 1, %s3
  %s6 = scalar_select 0, %s5, %s3
  $region1: #{tpu_custom_call.1} parent=0
    #allocation3 [shape = 'u8[1024]{0}', space=vmem, size = 0x400, scoped, tag = 'input window, operand 0, single buffered']
    #allocation4 [shape = 's32[1]{0}', space=sflag, size = 0x4, scoped, tag = 'scoped memory for tpu_custom_call.1']
    #allocation5 [shape = 's32[1]{0}', space=sflag, size = 0x4, scoped, tag = 'scoped memory for tpu_custom_call.1']
    #allocation6 [shape = 'u8[1024]{0}', space=vmem, size = 0x400, scoped, tag = 'input window, operand 1, single buffered']
    #allocation7 [shape = 's32[1]{0}', space=sflag, size = 0x4, scoped, tag = 'scoped memory for tpu_custom_call.1']
    #allocation8 [shape = 'u8[512]{0}', space=smem, size = 0x200, scoped, tag = 'output window, operand 0, single buffered']
    %7 = vsyncpa [#allocation4], 0
    %8 = vsyncpa [#allocation7], 0
    %9 = vsyncpa [#allocation5], 0
    // Predicated region
    $region2: #{tpu_custom_call.1} parent=1 // pred_check
      _
    $region3: #{tpu_custom_call.1} parent=1 // pred_check_branch
      %11 = sbr.rel (0) target = $region5
    $region4: #{tpu_custom_call.1} parent=1 // pred_region
      %s13 = ssub.s32 32, 32
      %14 = vsyncadd [#allocation4], %s13
      %s16 = sshll.u32 [#allocation3], 4
      %s17 = int_to_ptr.vmem [resolvable:$true] %s16
      %19 = dma.hbm_to_vmem [thread:$0]  %s0, 32, %s17, [#allocation4]
    $region5: #{tpu_custom_call.1} parent=1 // pred_fallthru
      _
    // Predicated region
    $region6: #{tpu_custom_call.1} parent=1 // pred_check
      _
    $region7: #{tpu_custom_call.1} parent=1 // pred_check_branch
      %21 = sbr.rel (0) target = $region9
    $region8: #{tpu_custom_call.1} parent=1 // pred_region
      %s23 = ssub.s32 32, 32
      %24 = vsyncadd [#allocation7], %s23
      %s26 = sshll.u32 [#allocation6], 4
      %s27 = int_to_ptr.vmem [resolvable:$true] %s26
      %29 = dma.hbm_to_vmem [thread:$0]  %s1, 32, %s27, [#allocation7]
    $region9: #{tpu_custom_call.1} parent=1 // pred_fallthru
      _
    // Predicated region
    $region10: #{tpu_custom_call.1} parent=1 // pred_check
      _
    $region11: #{tpu_custom_call.1} parent=1 // pred_check_branch
      %31 = sbr.rel (0) target = $region13
    $region12: #{tpu_custom_call.1} parent=1 // pred_region
      %32 = dma.done [#allocation4], 32
    $region13: #{tpu_custom_call.1} parent=1 // pred_fallthru
      _
    // Predicated region
    $region14: #{tpu_custom_call.1} parent=1 // pred_check
      _
    $region15: #{tpu_custom_call.1} parent=1 // pred_check_branch
      %34 = sbr.rel (0) target = $region17
    $region16: #{tpu_custom_call.1} parent=1 // pred_region
      %35 = dma.done [#allocation7], 32
    $region17: #{tpu_custom_call.1} parent=1 // pred_fallthru
      _
    %p36 = scmp.eq.s32.totalorder 0, 0
    // Predicated region
    $region18: #{tpu_custom_call.1} parent=1 // pred_check
      %p37 = pneg %p36
    $region19: #{tpu_custom_call.1} parent=1 // pred_check_branch
      %39 = sbr.rel (%p37) target = $region21
    $region20: #{tpu_custom_call.1} parent=1 // pred_region
      %40 = vst [vmem:[#allocation2] sm:$0x1] 0.0
    $region21: #{tpu_custom_call.1} parent=1 // pred_fallthru
      _
    %v41 = vld [vmem:[#allocation3] sm:$0x3]
    %v42 = vld [vmem:[#allocation6] sm:$0x3]
    %v43 = vadd.f32 %v42, 1.0
    %v44 = vmul.f32 %v41, %v41
    %v45 = vsub.f32 %v43, %v44
    %v46 = vmul.f32 %v42, 1.442695
    %v47 = vpow.pop %v46
    %v48 = vsub.f32 %v45, %v47
    %v49 = vld [vmem:[#allocation2] sm:$0x1]
    %vm50 = vcmask 1041408
    %v51 = vsel %vm50, %v48, 0.0
    %v52 = vrot.slane %v51, 4
    %v53 = vadd.f32 %v51, %v52
    %v54 = vrot.slane %v53, 2
    %v55 = vadd.f32 %v53, %v54
    %v56 = vrot.slane %v55, 1
    %v57 = vadd.f32 %v55, %v56
    %v58 = vadd.f32 %v49, %v57
    %59 = vst [vmem:[#allocation2] sm:$0x1] %v58
    // Predicated region
    $region22: #{tpu_custom_call.1} parent=1 // pred_check
      %p60 = pneg %p36
    $region23: #{tpu_custom_call.1} parent=1 // pred_check_branch
      %62 = sbr.rel (%p60) target = $region25
    $region24: #{tpu_custom_call.1} parent=1 // pred_region
      %v63 = vld [vmem:[#allocation2] sm:$0x1]
      %vm64 = vcmask 1040384
      %v65 = vsel %vm64, %v63, 0.0
      %66 = vadd.xlane.f32.xlu0 %v65
      %v67 = vpop.xlane.xlu0 %66
      %v68 = vrot.slane %v67, 4
      %v69 = vadd.f32 %v67, %v68
      %v70 = vrot.slane %v69, 2
      %v71 = vadd.f32 %v69, %v70
      %v72 = vrot.slane %v71, 1
      %v73 = vadd.f32 %v71, %v72
      %s74 = vtos %v73
      %s75 = smul.f32 %s74, -0.5
      %s76 = scalar_lea.smem [#allocation8], 0
      %77 = sst [smem:[%s76]] %s75
    $region25: #{tpu_custom_call.1} parent=1 // pred_fallthru
      _
    // Predicated region
    $region26: #{tpu_custom_call.1} parent=1 // pred_check
      _
    $region27: #{tpu_custom_call.1} parent=1 // pred_check_branch
      %79 = sbr.rel (0) target = $region29
    $region28: #{tpu_custom_call.1} parent=1 // pred_region
      %s81 = ssub.s32 16, 16
      %82 = vsyncadd [#allocation5], %s81
      %85 = dma.smem_to_hbm [#allocation8], 16, %s2, [#allocation5]
    $region29: #{tpu_custom_call.1} parent=1 // pred_fallthru
      _
    // Predicated region
    $region30: #{tpu_custom_call.1} parent=1 // pred_check
      _
    $region31: #{tpu_custom_call.1} parent=1 // pred_check_branch
      %87 = sbr.rel (0) target = $region33
    $region32: #{tpu_custom_call.1} parent=1 // pred_region
      %88 = dma.done [#allocation5], 16
    $region33: #{tpu_custom_call.1} parent=1 // pred_fallthru
      _
    %89 = sfence
    %90 = vsyncpa [#allocation4], 1
    %91 = vsyncpa [#allocation7], 1
    %92 = vsyncpa [#allocation5], 1

</llo_original>
